<compile_context>
chip_gen: v5e
topology: v5e:2x2
jax: 0.10.0
libtpu: 0.0.40
codegen_flags: <defaults>
</compile_context>

<pallas_src>
from functools import partial

import jax
import jax.numpy as jnp
import numpy as np
from jax.experimental import pallas as pl
from jax.experimental.pallas import tpu as pltpu


def _round_up(x, m):
    return ((x + m - 1) // m) * m


# ----------------------------------------------------------------------------
# Kernel 1: "backbone" projection + tanh + L2-normalize on pooled tokens.
#   x    : (ROWS_PAD, E_PAD) bf16  gathered last-token embeddings (q ++ d)
#   w    : (E_PAD, H_PAD)    bf16  projection weight
#   b    : (1, H_PAD)        f32   projection bias
#   rep  : (ROWS_PAD, H_PAD) f32   L2-normalized sentence embeddings
# grid = (rows / ROW_TILE, E_PAD / E_TILE); rows parallel, E is the reduction.
# ----------------------------------------------------------------------------
def _encode_kernel(x_ref, w_ref, b_ref, rep_ref, acc_ref):
    k = pl.program_id(1)

    @pl.when(k == 0)
    def _():
        acc_ref[...] = jnp.zeros_like(acc_ref)

    # bf16 operands, f32 accumulation (MXU-friendly on v5e/v6e/v7x).
    acc_ref[...] += jnp.dot(x_ref[...], w_ref[...],
                            preferred_element_type=jnp.float32)

    @pl.when(k == pl.num_programs(1) - 1)
    def _():
        h = jnp.tanh(acc_ref[...] + b_ref[...])          # bias broadcast: once per row tile
        ssq = jnp.sum(h * h, axis=-1, keepdims=True)
        # F.normalize: x / max(||x||, 1e-12) == x * rsqrt(max(||x||^2, 1e-24))
        rep_ref[...] = h * jax.lax.rsqrt(jnp.maximum(ssq, 1e-24))


# ----------------------------------------------------------------------------
# Kernel 2: similarity matmul (with 1/temperature folded into q) + CE loss.
#   q      : (QP, H_PAD) f32      d : (DP, H_PAD) f32   (DP is lane-dense, 128x)
#   scores : (QP, DP)    f32      loss : (1, 1)   f32 in SMEM
# grid = (QP / ROW_TILE,), marked "arbitrary" (loss is accumulated across it).
# ----------------------------------------------------------------------------
def _sim_ce_kernel(q_ref, d_ref, scores_ref, loss_ref, *,
                   inv_temp, bq, bd, row_tile):
    i = pl.program_id(0)

    # Fold 1/temperature into the (ROW_TILE, H) q operand instead of scaling
    # the (Bq, Bd) scores; bf16 operands, f32 accumulation on the MXU.
    q = (q_ref[...] * inv_temp).astype(jnp.bfloat16)
    d = d_ref[...].astype(jnp.bfloat16)
    s = jax.lax.dot_general(q, d, (((1,), (1,)), ((), ())),
                            preferred_element_type=jnp.float32)   # q @ d.T
    scores_ref[...] = s                                           # lane-dense store

    rt, dp = s.shape
    row_ids = i * row_tile + jax.lax.broadcasted_iota(jnp.int32, (rt, dp), 0)
    col_ids = jax.lax.broadcasted_iota(jnp.int32, (rt, dp), 1)

    # masked, numerically-stable logsumexp over the real Bd columns only
    s_valid = jnp.where(col_ids < bd, s, jnp.float32(-1e30))
    mx = jnp.max(s_valid, axis=-1, keepdims=True)
    lse = mx + jnp.log(jnp.sum(jnp.exp(s_valid - mx), axis=-1, keepdims=True))

    # CE with target = arange(Bq):  loss = mean(lse - diag)  (no full log-probs)
    diag = jnp.sum(jnp.where(col_ids == row_ids, s, 0.0), axis=-1, keepdims=True)
    row_ok = (i * row_tile
              + jax.lax.broadcasted_iota(jnp.int32, (rt, 1), 0)) < bq
    tile_nll = jnp.sum(jnp.where(row_ok, lse - diag, 0.0))

    @pl.when(i == 0)
    def _():
        loss_ref[0, 0] = jnp.float32(0.0)

    loss_ref[0, 0] += tile_nll

    @pl.when(i == pl.num_programs(0) - 1)
    def _():
        loss_ref[0, 0] = loss_ref[0, 0] / bq


# ----------------------------------------------------------------------------
# Wrapper: pooling indices + last-token gather (index plumbing), padding to
# MXU/lane-friendly shapes, and the two pallas_calls.
# ----------------------------------------------------------------------------
def simcse_forward(q_tok_emb, q_mask, d_tok_emb, d_mask, w, b, temperature=0.02):
    f32 = jnp.float32
    Bq, L, E = q_tok_emb.shape
    Bd = d_tok_emb.shape[0]
    H = w.shape[1]

    # ---- last_token_pool indices (exact PyTorch semantics) ----
    def pool_idx(mask):
        m = mask.astype(jnp.int32)
        Bm, Lm = m.shape
        seq_len = jnp.sum(m, axis=1)
        left_padding = jnp.sum(m[:, -1]) == Bm
        return jnp.where(left_padding, Lm - 1, seq_len - 1)

    q_idx = pool_idx(q_mask)
    d_idx = pool_idx(d_mask)

    # Pool BEFORE projecting (the per-token projection commutes with last-token
    # selection): gather one (E,) row per sequence -> (B, E). Pure index plumbing.
    q_last = jnp.take_along_axis(q_tok_emb.astype(f32),
                                 q_idx[:, None, None], axis=1)[:, 0, :]
    d_last = jnp.take_along_axis(d_tok_emb.astype(f32),
                                 d_idx[:, None, None], axis=1)[:, 0, :]

    # ---- pad to MXU / lane friendly shapes (layout plumbing) ----
    E_PAD = _round_up(E, 128)
    H_PAD = _round_up(H, 128)
    ROW_TILE = 8                     # demo-sized; use 128/256 row tiles at real batch
    E_TILE = 128
    ROWS = Bq + Bd
    ROWS_PAD = _round_up(ROWS, ROW_TILE)

    x = jnp.concatenate([q_last, d_last], axis=0)                       # (ROWS, E)
    x = jnp.pad(x, ((0, ROWS_PAD - ROWS), (0, E_PAD - E))).astype(jnp.bfloat16)
    w_p = jnp.pad(w.astype(f32), ((0, E_PAD - E), (0, H_PAD - H))).astype(jnp.bfloat16)
    b_p = jnp.pad(b.astype(f32), (0, H_PAD - H)).reshape(1, H_PAD)

    reps = pl.pallas_call(
        _encode_kernel,
        out_shape=jax.ShapeDtypeStruct((ROWS_PAD, H_PAD), f32),
        grid=(ROWS_PAD // ROW_TILE, E_PAD // E_TILE),
        in_specs=[
            pl.BlockSpec((ROW_TILE, E_TILE), lambda i, k: (i, k)),
            pl.BlockSpec((E_TILE, H_PAD), lambda i, k: (k, 0)),
            pl.BlockSpec((1, H_PAD), lambda i, k: (0, 0)),
        ],
        out_specs=pl.BlockSpec((ROW_TILE, H_PAD), lambda i, k: (i, 0)),
        scratch_shapes=[pltpu.VMEM((ROW_TILE, H_PAD), f32)],
        compiler_params=pltpu.CompilerParams(
            dimension_semantics=("parallel", "arbitrary"),
            vmem_limit_bytes=32 * 1024 * 1024,
        ),
    )(x, w_p, b_p)

    q_rep = reps[:Bq, :H]            # padded H columns are exactly zero
    d_rep = reps[Bq:Bq + Bd, :H]

    # ---- similarity + cross-entropy ----
    QP = _round_up(Bq, ROW_TILE)
    DP = _round_up(Bd, 128)          # lane-dense last dim for the scores output
    q_pad = jnp.pad(reps[:Bq], ((0, QP - Bq), (0, 0)))
    d_pad = jnp.pad(reps[Bq:Bq + Bd], ((0, DP - Bd), (0, 0)))

    scores_pad, loss = pl.pallas_call(
        partial(_sim_ce_kernel, inv_temp=float(1.0 / temperature),
                bq=Bq, bd=Bd, row_tile=ROW_TILE),
        out_shape=(
            jax.ShapeDtypeStruct((QP, DP), f32),
            jax.ShapeDtypeStruct((1, 1), f32),
        ),
        grid=(QP // ROW_TILE,),
        in_specs=[
            pl.BlockSpec((ROW_TILE, H_PAD), lambda i: (i, 0)),
            pl.BlockSpec((DP, H_PAD), lambda i: (0, 0)),
        ],
        out_specs=(
            pl.BlockSpec((ROW_TILE, DP), lambda i: (i, 0)),
            pl.BlockSpec((1, 1), lambda i: (0, 0),
                         memory_space=pltpu.MemorySpace.SMEM),
        ),
        compiler_params=pltpu.CompilerParams(
            dimension_semantics=("arbitrary",),
            vmem_limit_bytes=32 * 1024 * 1024,
        ),
    )(q_pad, d_pad)

    return dict(loss=loss[0, 0], scores=scores_pad[:Bq, :Bd],
                query_emb=q_rep, doc_emb=d_rep)


# ----------------------------------------------------------------------------
# Pure-JAX f32 reference mirroring the PyTorch module structure
# (project all tokens, then last-token pool) for the correctness check.
# ----------------------------------------------------------------------------
def _reference(q_tok_emb, q_mask, d_tok_emb, d_mask, w, b, temperature=0.02):
    def encode(e, m):
        B, L, E = e.shape
        h = jnp.tanh(e.reshape(B * L, E) @ w + b).reshape(B, L, -1)
        mf = m.astype(jnp.float32)
        seq_len = jnp.sum(mf, axis=1).astype(jnp.int32)
        left_pad = jnp.sum(mf[:, -1]) == float(B)
        idx = jnp.where(left_pad, L - 1, seq_len - 1)
        pooled = h[jnp.arange(B), idx]
        norm = jnp.linalg.norm(pooled, axis=-1, keepdims=True)
        return pooled / jnp.maximum(norm, 1e-12)

    q = encode(q_tok_emb, q_mask)
    d = encode(d_tok_emb, d_mask)
    scores = (q @ d.T) / temperature
    logp = jax.nn.log_softmax(scores, axis=-1)
    loss = -jnp.mean(logp[jnp.arange(scores.shape[0]), jnp.arange(scores.shape[0])])
    return loss, scores, q, d


if __name__ == "__main__":
    # small shapes: batch=4 (BATCH_SIZE), seq=8, embed=32, hidden=32, vocab=64
    Bq, Bd, L, E, H, V = 4, 4, 8, 32, 32, 64
    TEMP = 0.02

    key = jax.random.PRNGKey(0)
    k_emb, k_w, k_b, k_qid, k_did = jax.random.split(key, 5)

    embed_table = jax.random.normal(k_emb, (V, E), dtype=jnp.float32) * 0.1
    w = jax.random.normal(k_w, (E, H), dtype=jnp.float32) * 0.1
    b = jax.random.normal(k_b, (H,), dtype=jnp.float32) * 0.01

    # deterministic inputs (right-padded -> last_token_pool takes the gather path)
    q_ids = jax.random.randint(k_qid, (Bq, L), 0, V)
    d_ids = jax.random.randint(k_did, (Bd, L), 0, V)
    q_lens = jnp.array([8, 5, 6, 3], dtype=jnp.int32)
    d_lens = jnp.array([8, 7, 4, 6], dtype=jnp.int32)
    pos = jnp.arange(L, dtype=jnp.int32)[None, :]
    q_mask = (pos < q_lens[:, None]).astype(jnp.int32)
    d_mask = (pos < d_lens[:, None]).astype(jnp.int32)

    # glue: token-embedding lookup (stands in for the transformer backbone input)
    q_tok_emb = embed_table[q_ids]    # (Bq, L, E)
    d_tok_emb = embed_table[d_ids]    # (Bd, L, E)

    out = simcse_forward(q_tok_emb, q_mask, d_tok_emb, d_mask, w, b, TEMP)
    jax.block_until_ready(out["loss"])

    ref_loss, ref_scores, ref_q, ref_d = _reference(
        q_tok_emb, q_mask, d_tok_emb, d_mask, w, b, TEMP)

    # Kernel uses bf16 MXU operands (f32 accumulate) vs a pure-f32 reference,
    # so tolerances are loosened accordingly (per review note).
    np.testing.assert_allclose(np.asarray(out["query_emb"]), np.asarray(ref_q),
                               rtol=2e-2, atol=1e-2)
    np.testing.assert_allclose(np.asarray(out["doc_emb"]), np.asarray(ref_d),
                               rtol=2e-2, atol=1e-2)
    np.testing.assert_allclose(np.asarray(out["scores"]), np.asarray(ref_scores),
                               rtol=2e-2, atol=3e-1)
    np.testing.assert_allclose(np.asarray(out["loss"]), np.asarray(ref_loss),
                               rtol=2e-2, atol=3e-1)

    print("KERNEL_OK")
</pallas_src>

<mosaic_0001>
module attributes {stable_mosaic.version = 11 : i64} {
  func.func @_encode_kernel(%arg0: i32, %arg1: i32, %arg2: memref<8x128xbf16, #tpu.memory_space<vmem>>, %arg3: memref<128x128xbf16, #tpu.memory_space<vmem>>, %arg4: memref<1x128xf32, #tpu.memory_space<vmem>>, %arg5: memref<8x128xf32, #tpu.memory_space<vmem>>, %arg6: memref<8x128xf32, #tpu.memory_space<vmem>>) attributes {dimension_semantics = [#tpu.dimension_semantics<parallel>, #tpu.dimension_semantics<arbitrary>], iteration_bounds = array<i64: 1, 1>, scalar_prefetch = 0 : i64, scratch_operands = 1 : i64, tpu.core_type = #tpu.core_type<tc>, window_params = [{transform_indices = @transform_0, window_bounds = array<i64: 8, 128>}, {transform_indices = @transform_1, window_bounds = array<i64: 128, 128>}, {pipeline_mode = #tpu.pipeline_mode<synchronous>, transform_indices = @transform_2, window_bounds = array<i64: 1, 128>}, {transform_indices = @transform_3, window_bounds = array<i64: 8, 128>}]} {
    %c0_i32 = arith.constant 0 : i32
    %0 = arith.cmpi eq, %arg1, %c0_i32 : i32
    %1 = arith.extui %0 : i1 to i32
    %c0_i32_0 = arith.constant 0 : i32
    %2 = arith.cmpi ne, %1, %c0_i32_0 : i32
    scf.if %2 {
      %cst_10 = arith.constant 0.000000e+00 : f32
      %12 = vector.broadcast %cst_10 : f32 to vector<8x128xf32>
      %c0_11 = arith.constant 0 : index
      %c0_12 = arith.constant 0 : index
      %13 = vector.load %arg6[%c0_11, %c0_12] : memref<8x128xf32, #tpu.memory_space<vmem>>, vector<8x128xf32>
      tpu.vector_store %arg6[%c0_11, %c0_12], %12 {strides = array<i32>} : memref<8x128xf32, #tpu.memory_space<vmem>>, vector<8x128xf32>,
    } else {
    }
    %c0 = arith.constant 0 : index
    %c0_1 = arith.constant 0 : index
    %3 = vector.load %arg6[%c0, %c0_1] : memref<8x128xf32, #tpu.memory_space<vmem>>, vector<8x128xf32>
    %c0_2 = arith.constant 0 : index
    %c0_3 = arith.constant 0 : index
    %4 = vector.load %arg2[%c0_2, %c0_3] : memref<8x128xbf16, #tpu.memory_space<vmem>>, vector<8x128xbf16>
    %c0_4 = arith.constant 0 : index
    %c0_5 = arith.constant 0 : index
    %5 = vector.load %arg3[%c0_4, %c0_5] : memref<128x128xbf16, #tpu.memory_space<vmem>>, vector<128x128xbf16>
    %cst = arith.constant dense<0.000000e+00> : vector<8x128xf32>
    %6 = tpu.matmul %4, %5, %cst {dimension_numbers = #tpu.dot_dimension_numbers<[1], [0], [0], [1], [0, 0, 1, 1], [], []>} : vector<8x128xbf16>, vector<128x128xbf16>, vector<8x128xf32> -> vector<8x128xf32>
    %7 = arith.addf %3, %6 : vector<8x128xf32>
    %c0_6 = arith.constant 0 : index
    %c0_7 = arith.constant 0 : index
    %8 = vector.load %arg6[%c0_6, %c0_7] : memref<8x128xf32, #tpu.memory_space<vmem>>, vector<8x128xf32>
    tpu.vector_store %arg6[%c0_6, %c0_7], %7 {strides = array<i32>} : memref<8x128xf32, #tpu.memory_space<vmem>>, vector<8x128xf32>,
    %c0_i32_8 = arith.constant 0 : i32
    %9 = arith.cmpi eq, %arg1, %c0_i32_8 : i32
    %10 = arith.extui %9 : i1 to i32
    %c0_i32_9 = arith.constant 0 : i32
    %11 = arith.cmpi ne, %10, %c0_i32_9 : i32
    scf.if %11 {
      %c0_10 = arith.constant 0 : index
      %c0_11 = arith.constant 0 : index
      %12 = vector.load %arg6[%c0_10, %c0_11] : memref<8x128xf32, #tpu.memory_space<vmem>>, vector<8x128xf32>
      %c0_12 = arith.constant 0 : index
      %c0_13 = arith.constant 0 : index
      %13 = vector.load %arg4[%c0_12, %c0_13] : memref<1x128xf32, #tpu.memory_space<vmem>>, vector<1x128xf32>
      %14 = vector.broadcast %13 : vector<1x128xf32> to vector<8x128xf32>
      %15 = arith.addf %12, %14 : vector<8x128xf32>
      %16 = math.tanh %15 : vector<8x128xf32>
      %17 = arith.mulf %16, %16 : vector<8x128xf32>
      %cst_14 = arith.constant dense<0.000000e+00> : vector<8xf32>
      %18 = vector.multi_reduction <add>, %17, %cst_14 [1] : vector<8x128xf32> to vector<8xf32>
      %19 = vector.shape_cast %18 : vector<8xf32> to vector<8x1xf32>
      %cst_15 = arith.constant 1.000000e-24 : f32
      %20 = vector.broadcast %cst_15 : f32 to vector<8x1xf32>
      %21 = arith.maximumf %19, %20 : vector<8x1xf32>
      %22 = math.rsqrt %21 : vector<8x1xf32>
      %23 = vector.broadcast %22 : vector<8x1xf32> to vector<8x128xf32>
      %24 = arith.mulf %16, %23 : vector<8x128xf32>
      %c0_16 = arith.constant 0 : index
      %c0_17 = arith.constant 0 : index
      %25 = vector.load %arg5[%c0_16, %c0_17] : memref<8x128xf32, #tpu.memory_space<vmem>>, vector<8x128xf32>
      tpu.vector_store %arg5[%c0_16, %c0_17], %24 {strides = array<i32>} : memref<8x128xf32, #tpu.memory_space<vmem>>, vector<8x128xf32>,
    } else {
    }
    return
  }
  func.func @transform_0(%arg0: i32, %arg1: i32) -> (i32, i32) {
    %c0_i32 = arith.constant 0 : i32
    return %arg0, %arg1 : i32, i32
  }
  func.func @transform_1(%arg0: i32, %arg1: i32) -> (i32, i32) {
    %c0_i32 = arith.constant 0 : i32
    %c0_i32_0 = arith.constant 0 : i32
    return %arg1, %c0_i32 : i32, i32
  }
  func.func @transform_2(%arg0: i32, %arg1: i32) -> (i32, i32) {
    %c0_i32 = arith.constant 0 : i32
    %c0_i32_0 = arith.constant 0 : i32
    %c0_i32_1 = arith.constant 0 : i32
    return %c0_i32, %c0_i32_0 : i32, i32
  }
  func.func @transform_3(%arg0: i32, %arg1: i32) -> (i32, i32) {
    %c0_i32 = arith.constant 0 : i32
    %c0_i32_0 = arith.constant 0 : i32
    return %arg0, %c0_i32 : i32, i32
  }
}

</mosaic_0001>

<llo_original>
// kernel: tpu_custom_call.1
$region0: #{tpu_custom_call.1}
  #allocation0 [shape = 'u32[]', space=smem, size = 0x4, offset = 0x4, fixed_abs, tag = 'smem constant byte address 0x4 - core index']
  #allocation1 [shape = 'u32[72,128]{1,0:T(1,128)}', space=vmem, size = 0x9000, scoped, tag = 'internal scratch']
  #allocation2 [shape = 'f32[8,128]{1,0:T(8,128)}', space=vmem, size = 0x1000, scoped, tag = 'scratch operand']
  %s0 = inlined_call_operand.hbm [shape: bf16[8,128], index: 0, kind: input, shape index: {}]
  %s1 = inlined_call_operand.hbm [shape: bf16[128,128], index: 1, kind: input, shape index: {}]
  %s2 = inlined_call_operand.vmem [shape: f32[1,128], index: 2, kind: input, shape index: {}]
  %s3 = inlined_call_operand.hbm [shape: f32[8,128], index: 3, kind: output, shape index: {}]
  %s4 = sld [smem:[#allocation0]]
  $region38: #{tpu_custom_call.1} parent=0
    _
  %s6 = ssub.s32 1, %s4
  %s7 = scalar_select 0, %s6, %s4
  $region1: #{tpu_custom_call.1} parent=0
    #allocation3 [shape = 'u8[2048]{0}', space=vmem, size = 0x800, scoped, tag = 'input window, operand 0, single buffered']
    #allocation4 [shape = 's32[1]{0}', space=sflag, size = 0x4, scoped, tag = 'scoped memory for tpu_custom_call.1']
    #allocation5 [shape = 's32[1]{0}', space=sflag, size = 0x4, scoped, tag = 'scoped memory for tpu_custom_call.1']
    #allocation6 [shape = 'u8[32768]{0}', space=vmem, size = 0x8000, scoped, tag = 'input window, operand 1, single buffered']
    #allocation7 [shape = 's32[1]{0}', space=sflag, size = 0x4, scoped, tag = 'scoped memory for tpu_custom_call.1']
    #allocation8 [shape = 'u8[4096]{0}', space=vmem, size = 0x1000, scoped, tag = 'output window, operand 0, single buffered']
    %8 = vsyncpa [#allocation4], 0
    %9 = vsyncpa [#allocation7], 0
    %10 = vsyncpa [#allocation5], 0
    // Predicated region
    $region2: #{tpu_custom_call.1} parent=1 // pred_check
      _
    $region3: #{tpu_custom_call.1} parent=1 // pred_check_branch
      %12 = sbr.rel (0) target = $region5
    $region4: #{tpu_custom_call.1} parent=1 // pred_region
      %14 = vsyncadd [#allocation4], 0
      %s16 = sshll.u32 %s0, 4
      %s17 = int_to_ptr.hbm [resolvable:$true] %s16
      %s18 = sshll.u32 [#allocation3], 4
      %s19 = int_to_ptr.vmem [resolvable:$true] %s18
      %21 = dma.hbm_to_vmem [thread:$0]  %s17, 64, %s19, [#allocation4]
    $region5: #{tpu_custom_call.1} parent=1 // pred_fallthru
      _
    // Predicated region
    $region6: #{tpu_custom_call.1} parent=1 // pred_check
      _
    $region7: #{tpu_custom_call.1} parent=1 // pred_check_branch
      %23 = sbr.rel (0) target = $region9
    $region8: #{tpu_custom_call.1} parent=1 // pred_region
      %25 = vsyncadd [#allocation7], 0
      %s26 = sshll.u32 %s1, 4
      %s27 = int_to_ptr.hbm [resolvable:$true] %s26
      %s28 = sshll.u32 [#allocation6], 4
      %s29 = int_to_ptr.vmem [resolvable:$true] %s28
      %34 = dma.hbm_to_vmem [thread:$0]  %s27, 1024, %s29, [#allocation7], 64, 64, 4
    $region9: #{tpu_custom_call.1} parent=1 // pred_fallthru
      _
    // Predicated region
    $region10: #{tpu_custom_call.1} parent=1 // pred_check
      _
    $region11: #{tpu_custom_call.1} parent=1 // pred_check_branch
      %36 = sbr.rel (0) target = $region13
    $region12: #{tpu_custom_call.1} parent=1 // pred_region
      _
    $region13: #{tpu_custom_call.1} parent=1 // pred_fallthru
      _
    // Predicated region
    $region14: #{tpu_custom_call.1} parent=1 // pred_check
      _
    $region15: #{tpu_custom_call.1} parent=1 // pred_check_branch
      %38 = sbr.rel (0) target = $region17
    $region16: #{tpu_custom_call.1} parent=1 // pred_region
      %40 = dma.done [#allocation4], 64
    $region17: #{tpu_custom_call.1} parent=1 // pred_fallthru
      _
    // Predicated region
    $region18: #{tpu_custom_call.1} parent=1 // pred_check
      _
    $region19: #{tpu_custom_call.1} parent=1 // pred_check_branch
      %42 = sbr.rel (0) target = $region21
    $region20: #{tpu_custom_call.1} parent=1 // pred_region
      %44 = dma.done [#allocation7], 1024
    $region21: #{tpu_custom_call.1} parent=1 // pred_fallthru
      _
    %p45 = scmp.eq.s32.totalorder 0, 0
    // Predicated region
    $region22: #{tpu_custom_call.1} parent=1 // pred_check
      %p46 = pneg %p45
    $region23: #{tpu_custom_call.1} parent=1 // pred_check_branch
      %48 = sbr.rel (%p46) target = $region25
    $region24: #{tpu_custom_call.1} parent=1 // pred_region
      %49 = vst [vmem:[#allocation2] sm:$0xff] 0.0
    $region25: #{tpu_custom_call.1} parent=1 // pred_fallthru
      _
    %v50 = vld [vmem:[#allocation2] sm:$0xff]
    %v51 = vld [vmem:[#allocation3] sm:$0xf]
    %v52 = vld [vmem:[#allocation6] sm:$0xf]
    %v53 = vld [vmem:[#allocation6 + $0x4] sm:$0xf]
    %v54 = vld [vmem:[#allocation6 + $0x8] sm:$0xf]
    %v55 = vld [vmem:[#allocation6 + $0xc] sm:$0xf]
    %v56 = vld [vmem:[#allocation6 + $0x10] sm:$0xf]
    %v57 = vld [vmem:[#allocation6 + $0x14] sm:$0xf]
    %v58 = vld [vmem:[#allocation6 + $0x18] sm:$0xf]
    %v59 = vld [vmem:[#allocation6 + $0x1c] sm:$0xf]
    %v60 = vld [vmem:[#allocation6 + $0x20] sm:$0xf]
    %v61 = vld [vmem:[#allocation6 + $0x24] sm:$0xf]
    %v62 = vld [vmem:[#allocation6 + $0x28] sm:$0xf]
    %v63 = vld [vmem:[#allocation6 + $0x2c] sm:$0xf]
    %v64 = vld [vmem:[#allocation6 + $0x30] sm:$0xf]
    %v65 = vld [vmem:[#allocation6 + $0x34] sm:$0xf]
    %v66 = vld [vmem:[#allocation6 + $0x38] sm:$0xf]
    %v67 = vld [vmem:[#allocation6 + $0x3c] sm:$0xf]
    %v84 = vunpack.c.l.b16 %v52
    %v85 = vunpack.c.l.b16 %v53
    %v86 = vunpack.c.l.b16 %v54
    %v87 = vunpack.c.l.b16 %v55
    %v88 = vunpack.c.l.b16 %v56
    %v89 = vunpack.c.l.b16 %v57
    %v90 = vunpack.c.l.b16 %v58
    %v91 = vunpack.c.l.b16 %v59
    %v92 = vunpack.c.l.b16 %v60
    %v93 = vunpack.c.l.b16 %v61
    %v94 = vunpack.c.l.b16 %v62
    %v95 = vunpack.c.l.b16 %v63
    %v96 = vunpack.c.l.b16 %v64
    %v97 = vunpack.c.l.b16 %v65
    %v98 = vunpack.c.l.b16 %v66
    %v99 = vunpack.c.l.b16 %v67
    %v100 = vpack.c.b16 %v85, %v84
    %v101 = vpack.c.b16 %v87, %v86
    %v102 = vpack.c.b16 %v89, %v88
    %v103 = vpack.c.b16 %v91, %v90
    %v104 = vpack.c.b16 %v93, %v92
    %v105 = vpack.c.b16 %v95, %v94
    %v106 = vpack.c.b16 %v97, %v96
    %v107 = vpack.c.b16 %v99, %v98
    %116 = vmatpush.bf16.msra.mxu0 %v107
    %117 = vmatpush.bf16.msra.mxu0 %v106
    %118 = vmatpush.bf16.msra.mxu0 %v105
    %119 = vmatpush.bf16.msra.mxu0 %v104
    %120 = vmatpush.bf16.msra.mxu0 %v103
    %121 = vmatpush.bf16.msra.mxu0 %v102
    %122 = vmatpush.bf16.msra.mxu0 %v101
    %123 = vmatpush.bf16.msra.mxu0 %v100
    %124 = vmatmul.bf16.gmra.mxu0 %v51
    %v125 = vpop.f32.mrf.mxu0
    %v126 = vadd.f32 0.0, %v125
    %v127 = vpop.f32.mrf.mxu0
    %128 = vdwg.mxu0
    %v129 = vadd.f32 %v50, %v126
    %130 = vst [vmem:[#allocation2] sm:$0xff] %v129
    // Predicated region
    $region26: #{tpu_custom_call.1} parent=1 // pred_check
      %p131 = pneg %p45
    $region27: #{tpu_custom_call.1} parent=1 // pred_check_branch
      %133 = sbr.rel (%p131) target = $region29
    $region28: #{tpu_custom_call.1} parent=1 // pred_region
      %v134 = vld [vmem:[#allocation2] sm:$0xff]
      %v135 = vld [vmem:[%s2] sm:$0x1]
      %v137 = vperm.slane %v135, 0
      %v139 = vadd.f32 %v134, %v137
      %v140 = vtanh.pop %v139
      %v141 = vmul.f32 %v140, %v140
      %142 = vadd.xlane.f32.xlu0 %v141
      %v143 = vpop.xlane.xlu0 %142
      %v144 = vmax.f32 %v143, 1e-24
      %v145 = vrsqrt.pop %v144
      %v146 = vmul.f32 %v145, %v144
      %v147 = vmul.f32 %v146, %v145
      %v148 = vmul.f32 0.5, %v147
      %v149 = vsub.f32 1.5, %v148
      %v150 = vmul.f32 %v145, %v149
      %vm151 = vweird.f32 %v144
      %vm152 = vweird.f32 %v145
      %vm153 = vmor %vm151, %vm152
      %v154 = vsel %vm153, %v145, %v150
      %v155 = vmul.f32 %v140, %v154
      %156 = vst [vmem:[#allocation8] sm:$0xff] %v155
    $region29: #{tpu_custom_call.1} parent=1 // pred_fallthru
      _
    // Predicated region
    $region30: #{tpu_custom_call.1} parent=1 // pred_check
      _
    $region31: #{tpu_custom_call.1} parent=1 // pred_check_branch
      %158 = sbr.rel (0) target = $region33
    $region32: #{tpu_custom_call.1} parent=1 // pred_region
      %160 = vsyncadd [#allocation5], 0
      %s162 = sshll.u32 [#allocation8], 4
      %s163 = int_to_ptr.vmem [resolvable:$true] %s162
      %s164 = sshll.u32 %s3, 4
      %s165 = int_to_ptr.hbm [resolvable:$true] %s164
      %167 = dma.vmem_to_hbm [thread:$0]  %s163, 128, %s165, [#allocation5]
    $region33: #{tpu_custom_call.1} parent=1 // pred_fallthru
      _
    // Predicated region
    $region34: #{tpu_custom_call.1} parent=1 // pred_check
      _
    $region35: #{tpu_custom_call.1} parent=1 // pred_check_branch
      %169 = sbr.rel (0) target = $region37
    $region36: #{tpu_custom_call.1} parent=1 // pred_region
      %171 = dma.done [#allocation5], 128
    $region37: #{tpu_custom_call.1} parent=1 // pred_fallthru
      _
    %172 = vsyncpa [#allocation4], 1
    %173 = vsyncpa [#allocation7], 1
    %174 = vsyncpa [#allocation5], 1

</llo_original>
